<compile_context>
chip_gen: v7x
topology: tpu7x:2x2x1
jax: 0.10.0
libtpu: 0.0.40
codegen_flags: <defaults>
</compile_context>

<pallas_src>
import math
from functools import partial

import numpy as np
import jax
import jax.numpy as jnp
from jax import lax
from jax.experimental import pallas as pl
from jax.experimental.pallas import tpu as pltpu

EPS = 1e-6
GELU_C = math.sqrt(2.0 / math.pi)


# ----------------------------- shared math (in-kernel only) -----------------------------

def _new_gelu(x):
    # NewGELU: 0.5*x*(1+tanh(sqrt(2/pi)*(x+0.044715*x^3)))
    return 0.5 * x * (1.0 + jnp.tanh(GELU_C * (x + 0.044715 * x ** 3)))


def _custom_norm(x, alpha, bias):
    # Matches Norm: alpha*(x-mean)/(std+eps)+bias, std is UNBIASED (torch default).
    mean = jnp.mean(x, axis=-1, keepdims=True)
    c = x - mean
    var = jnp.sum(c * c, axis=-1, keepdims=True) * (1.0 / (x.shape[-1] - 1))
    inv = pl.reciprocal(jnp.sqrt(var) + EPS, approx=True)   # EUP slot, ~free
    return alpha * c * inv + bias


# ----------------------------- Pallas kernels -----------------------------

def _linear_kernel(x_ref, w_ref, b_ref, o_ref):
    o_ref[...] = (jnp.dot(x_ref[...], w_ref[...],
                          preferred_element_type=jnp.float32)
                  + b_ref[...]).astype(o_ref.dtype)


def linear(x2d, w, b):
    n = x2d.shape[0]
    dout = w.shape[1]
    return pl.pallas_call(
        _linear_kernel,
        out_shape=jax.ShapeDtypeStruct((n, dout), jnp.float32),
    )(x2d, w, b.reshape(1, -1))


def _encoder_stack_kernel(x_ref, mask_ref, vecs_ref, wqkv_ref, bqkv_ref,
                          wo_ref, w1_ref, b1_ref, w2_ref,
                          fnab_ref, wmv_ref, bmv_ref,
                          out_ref, act_ref, *, d_model):
    E = d_model
    l = pl.program_id(1)

    # Layer 0: bring the batch's activation into the resident VMEM scratch.
    @pl.when(l == 0)
    def _():
        act_ref[...] = x_ref[0]

    x = act_ref[...]              # [S, E]
    mask_add = mask_ref[0]        # [1, S] additive mask (0 valid / -1e9 padded)
    vecs = vecs_ref[0]            # [6, E] packed per-layer vectors
    n1a = vecs[0:1, :]
    n1b = vecs[1:2, :]
    bo = vecs[2:3, :]
    n2a = vecs[3:4, :]
    n2b = vecs[4:5, :]
    b2 = vecs[5:6, :]

    # ---- self-attention block (k_mode == 0, dropout identity in eval) ----
    x2 = _custom_norm(x, n1a, n1b)
    qkv = (jnp.dot(x2, wqkv_ref[0], preferred_element_type=jnp.float32)
           + bqkv_ref[0])                                   # [S, 3E] fused QKV
    q = qkv[:, 0:E]
    k = qkv[:, E:2 * E]
    v = qkv[:, 2 * E:3 * E]
    scores = lax.dot_general(q, k, (((1,), (1,)), ((), ())),
                             preferred_element_type=jnp.float32)
    scores = scores * (1.0 / math.sqrt(E)) + mask_add       # d_k = d_model
    scores = scores - jnp.max(scores, axis=-1, keepdims=True)
    e = jnp.exp(scores)
    p = e * pl.reciprocal(jnp.sum(e, axis=-1, keepdims=True), approx=True)
    attn = jnp.dot(p, v, preferred_element_type=jnp.float32)          # [S, E]
    # All heads are identical in the reference; the head-concat @ wo is exactly
    # attn @ sum_of_head_blocks(wo), which the wrapper pre-computed (wo_ref).
    x = x + jnp.dot(attn, wo_ref[0], preferred_element_type=jnp.float32) + bo

    # ---- feed-forward block ----
    x2 = _custom_norm(x, n2a, n2b)
    hdn = _new_gelu(jnp.dot(x2, w1_ref[0], preferred_element_type=jnp.float32)
                    + b1_ref[0])
    x = x + jnp.dot(hdn, w2_ref[0], preferred_element_type=jnp.float32) + b2
    act_ref[...] = x

    # ---- last layer epilogue: final Norm + fused [mu | log_var] projection ----
    @pl.when(l == pl.num_programs(1) - 1)
    def _():
        td = _custom_norm(x, fnab_ref[0:1, :], fnab_ref[1:2, :])
        out_ref[0] = (jnp.dot(td, wmv_ref[...], preferred_element_type=jnp.float32)
                      + bmv_ref[...]).astype(out_ref.dtype)


def encoder_stack(x, mask_add, ep):
    # x: [B, S, E]; mask_add: [B, 1, S]; ep: packed per-layer + epilogue weights
    B, S, E = x.shape
    L = ep["wqkv"].shape[0]
    Fdim = ep["w1"].shape[2]
    width = ep["wmv"].shape[1]     # lane-dense padded output width (>= 128)

    def wspec(shape3):             # per-layer (stacked) weights, indexed by l
        return pl.BlockSpec(shape3, lambda b, l: (l, 0, 0))

    def cspec(shape2):             # constant epilogue weights
        return pl.BlockSpec(shape2, lambda b, l: (0, 0))

    in_specs = [
        pl.BlockSpec((1, S, E), lambda b, l: (b, 0, 0)),     # x
        pl.BlockSpec((1, 1, S), lambda b, l: (b, 0, 0)),     # mask_add
        wspec((1, 6, E)),                                    # packed vectors
        wspec((1, E, 3 * E)),                                # wqkv
        wspec((1, 1, 3 * E)),                                # bqkv
        wspec((1, E, E)),                                    # wo (head-summed)
        wspec((1, E, Fdim)),                                 # w1
        wspec((1, 1, Fdim)),                                 # b1
        wspec((1, Fdim, E)),                                 # w2
        cspec((2, E)),                                       # final norm [alpha; bias]
        cspec((E, width)),                                   # [mu_w | var_w | pad]
        cspec((1, width)),                                   # [mu_b | var_b | pad]
    ]
    return pl.pallas_call(
        partial(_encoder_stack_kernel, d_model=E),
        grid=(B, L),
        in_specs=in_specs,
        out_specs=pl.BlockSpec((1, S, width), lambda b, l: (b, 0, 0)),
        out_shape=jax.ShapeDtypeStruct((B, S, width), jnp.float32),
        scratch_shapes=[pltpu.VMEM((S, E), jnp.float32)],
        compiler_params=pltpu.CompilerParams(
            dimension_semantics=("parallel", "arbitrary")),
    )(x, mask_add, ep["vecs"], ep["wqkv"], ep["bqkv"], ep["wo"],
      ep["w1"], ep["b1"], ep["w2"], ep["fnab"], ep["wmv"], ep["bmv"])


def _gsage_kernel(x_ref, a_ref, w1_ref, b1_ref, w2_ref, b2_ref, o_ref):
    # PyG-style SAGEConv x2: out = lin_l(mean_aggr(x_j)) + lin_r(x_i)
    # fused as [A@x | x] @ [Wl ; Wr] + bl  (lin_r has no bias).
    x = x_ref[...]
    A = a_ref[...]                                          # row-normalized adjacency
    agg1 = jnp.dot(A, x, preferred_element_type=jnp.float32)
    h = jnp.maximum(
        jnp.dot(jnp.concatenate([agg1, x], axis=-1), w1_ref[...],
                preferred_element_type=jnp.float32) + b1_ref[...], 0.0)
    agg2 = jnp.dot(A, h, preferred_element_type=jnp.float32)
    out = (jnp.dot(jnp.concatenate([agg2, h], axis=-1), w2_ref[...],
                   preferred_element_type=jnp.float32) + b2_ref[...])   # [N, 1]
    # Lane-dense store: broadcast to 128 lanes, wrapper slices column 0.
    o_ref[...] = jnp.broadcast_to(out, o_ref.shape).astype(o_ref.dtype)


def graph_sage(x, A, p):
    n = x.shape[0]
    w1cat = jnp.concatenate([p["wl1"], p["wr1"]], axis=0)   # [2E, conv]
    w2cat = jnp.concatenate([p["wl2"], p["wr2"]], axis=0)   # [2*conv, 1]
    out_pad = pl.pallas_call(
        _gsage_kernel,
        out_shape=jax.ShapeDtypeStruct((n, 128), jnp.float32),
    )(x, A, w1cat, p["bl1"].reshape(1, -1), w2cat, p["bl2"].reshape(1, -1))
    return out_pad[:, :1]


# ----------------------------- parameter packing -----------------------------

def pack_encoder_params(params, nhead):
    layers = params["layers"]
    E = params["mu_w"].shape[0]
    width = max(128, 2 * E)

    def stack(fn):
        return jnp.stack([fn(lp) for lp in layers], axis=0)

    wmv = jnp.zeros((E, width), jnp.float32).at[:, :2 * E].set(
        jnp.concatenate([params["mu_w"], params["var_w"]], axis=1))
    bmv = jnp.zeros((1, width), jnp.float32).at[:, :2 * E].set(
        jnp.concatenate([params["mu_b"], params["var_b"]]).reshape(1, -1))

    return dict(
        wqkv=stack(lambda lp: jnp.concatenate([lp["wq"], lp["wk"], lp["wv"]], axis=1)),
        bqkv=stack(lambda lp: jnp.concatenate(
            [lp["bq"], lp["bk"], lp["bv"]]).reshape(1, -1)),
        wo=stack(lambda lp: lp["wo"].reshape(nhead, E, E).sum(axis=0)),
        vecs=stack(lambda lp: jnp.stack(
            [lp["n1a"], lp["n1b"], lp["bo"], lp["n2a"], lp["n2b"], lp["b2"]], axis=0)),
        w1=stack(lambda lp: lp["w1"]),
        b1=stack(lambda lp: lp["b1"].reshape(1, -1)),
        w2=stack(lambda lp: lp["w2"]),
        fnab=jnp.stack([params["fn_a"], params["fn_b"]], axis=0),
        wmv=wmv,
        bmv=bmv,
    )


def dual_embed(xc2d, xs2d, params):
    # d_embedding_layer(in_series_c) and s_embedding_layer(in_series) fused into
    # a single block-diagonal linear with a lane-dense (>=128) padded output.
    a_dim = xc2d.shape[1]
    E = params["d_emb_w"].shape[1]
    width = max(128, 2 * E)
    Wblk = jnp.zeros((2 * a_dim, width), jnp.float32)
    Wblk = Wblk.at[:a_dim, :E].set(params["d_emb_w"])
    Wblk = Wblk.at[a_dim:, E:2 * E].set(params["s_emb_w"])
    bcat = jnp.zeros((width,), jnp.float32)
    bcat = bcat.at[:E].set(params["d_emb_b"]).at[E:2 * E].set(params["s_emb_b"])
    xcat = jnp.concatenate([xc2d, xs2d], axis=-1)           # [N, 2*a_dim]
    out = linear(xcat, Wblk, bcat)                          # [N, width]
    return out[:, :E], out[:, E:2 * E]                      # (d_emb, s_emb)


# ----------------------------- parameters -----------------------------

def _kaiming(key, shape):
    # torch kaiming_normal_ (fan_in, gain=sqrt(2)); weights stored [in, out]
    return jax.random.normal(key, shape, jnp.float32) * math.sqrt(2.0 / shape[0])


def init_params(key, E, nhead, Fdim, a_dim, conv_dim, num_layers):
    keys = iter(jax.random.split(key, 64))
    p = {
        "d_emb_w": _kaiming(next(keys), (a_dim, E)), "d_emb_b": jnp.zeros((E,)),
        "s_emb_w": _kaiming(next(keys), (a_dim, E)), "s_emb_b": jnp.zeros((E,)),
        "mu_w": _kaiming(next(keys), (E, E)), "mu_b": jnp.zeros((E,)),
        "var_w": _kaiming(next(keys), (E, E)), "var_b": jnp.zeros((E,)),
        "fn_a": jnp.ones((E,)), "fn_b": jnp.zeros((E,)),
    }
    layers = []
    for _ in range(num_layers):
        layers.append(dict(
            n1a=jnp.ones((E,)), n1b=jnp.zeros((E,)),
            wq=_kaiming(next(keys), (E, E)), bq=jnp.zeros((E,)),
            wk=_kaiming(next(keys), (E, E)), bk=jnp.zeros((E,)),
            wv=_kaiming(next(keys), (E, E)), bv=jnp.zeros((E,)),
            wo=_kaiming(next(keys), (nhead * E, E)), bo=jnp.zeros((E,)),
            n2a=jnp.ones((E,)), n2b=jnp.zeros((E,)),
            w1=_kaiming(next(keys), (E, Fdim)), b1=jnp.zeros((Fdim,)),
            w2=_kaiming(next(keys), (Fdim, E)), b2=jnp.zeros((E,)),
        ))
    p["layers"] = layers
    p["gsage"] = dict(
        wl1=_kaiming(next(keys), (E, conv_dim)), bl1=jnp.zeros((conv_dim,)),
        wr1=_kaiming(next(keys), (E, conv_dim)),
        wl2=_kaiming(next(keys), (conv_dim, 1)), bl2=jnp.zeros((1,)),
        wr2=_kaiming(next(keys), (conv_dim, 1)),
    )
    return p


# ----------------------------- forward (eval mode) -----------------------------

def intp_forward(params, q_tokens, known, auxil, input_series, answers,
                 c_s, c_e, nhead, k_knn):
    B = q_tokens.shape[0]
    S1 = 1 + input_series.shape[1]
    a_dim = q_tokens.shape[-1]
    E = params["d_emb_w"].shape[1]

    in_series = jnp.concatenate([q_tokens[:, None, :], input_series], axis=1)  # [B,S1,a]
    # relative (eu) coordinates: subtract the first token's coords
    in_series_c = in_series.at[:, :, c_s:c_e].add(-in_series[:, 0:1, c_s:c_e])

    # fused d/s embedding (single pallas_call)
    dc_flat, s_flat = dual_embed(in_series_c.reshape(-1, a_dim),
                                 in_series.reshape(-1, a_dim), params)
    dc_emb = dc_flat.reshape(B, S1, E)
    d_emb = s_flat.reshape(B, S1, E)

    full_len = 1 + known + auxil                                      # host ints
    mask = (np.arange(S1)[None, :] < full_len[:, None]).astype(np.float32)
    mask_add = jnp.asarray((mask - 1.0) * 1e9).reshape(B, 1, S1)      # additive mask

    # fused L-layer transformer + final Norm + [mu | log_var] projection
    ep = pack_encoder_params(params, nhead)
    muvar = encoder_stack(dc_emb, mask_add, ep)                       # [B,S1,width]
    mu_d = muvar[:, :, :E]
    log_var_d = muvar[:, :, E:2 * E]
    std_d = jnp.exp(0.5 * log_var_d)
    noise_d = mu_d   # eval mode: no reparameterization noise

    def cut(padded, lengths):   # padded_seq_to_vectors with host-known lengths
        idx_b = np.concatenate([np.full(int(l), b) for b, l in enumerate(lengths)])
        idx_s = np.concatenate([np.arange(int(l)) for l in lengths])
        return padded[idx_b, idx_s], idx_b

    mu_d_cut, _ = cut(mu_d, full_len)
    std_d_cut, _ = cut(std_d, full_len)
    noise_d_cut, _ = cut(noise_d, full_len)

    z_d = d_emb - noise_d

    gl = known + 1
    x_l, indexer = cut(z_d, gl)
    t = jnp.concatenate([answers[:, None, None], input_series[:, :, 0:1]], axis=1)
    y_l, _ = cut(t, gl)
    c = jnp.concatenate([q_tokens[:, None, c_s:c_e], input_series[:, :, c_s:c_e]], axis=1)
    c_l, _ = cut(c, gl)

    # knn_graph(k, batch=indexer, loop=False) -> mean-aggregation adjacency
    N = int(gl.sum())
    diff = c_l[:, None, :] - c_l[None, :, :]
    dist = jnp.sqrt(jnp.sum(diff * diff, axis=-1))
    same = jnp.asarray(indexer)[:, None] == jnp.asarray(indexer)[None, :]
    invalid = (~same) | jnp.eye(N, dtype=bool)
    nbr = jnp.argsort(jnp.where(invalid, jnp.inf, dist), axis=-1)[:, :k_knn]   # [N,k]
    A = jnp.zeros((N, N), jnp.float32).at[jnp.arange(N)[:, None], nbr].set(1.0 / k_knn)

    # makeEdgeWeight (computed as in the reference; torch_geometric SAGEConv
    # ignores edge_weight, so it is not consumed by the GNN).
    e_dist = jnp.take_along_axis(dist, nbr, axis=-1).reshape(-1)
    edge_weight = (jnp.max(e_dist) - e_dist) / (jnp.max(e_dist) - jnp.min(e_dist))
    # TODO(synk): edge_weight intentionally unused downstream (matches PyG SAGEConv).
    del edge_weight

    output = graph_sage(x_l, A, params["gsage"])                     # [N, 1]

    offsets = np.concatenate([[0], np.cumsum(gl)[:-1]]).astype(np.int32)
    output_head = output[offsets]
    target_head = y_l[offsets]

    model_output = (output_head, output, y_l, mu_d_cut, std_d_cut, noise_d_cut)
    return model_output, target_head


# ----------------------------- demo -----------------------------

if __name__ == "__main__":
    # synthetic settings: a_dim = 1 + |eu|(2) + |non_eu|(2) + |op_dic|(5) = 10
    E, nhead, num_layers, conv_dim, k_knn = 32, 2, 2, 16, 3
    Fdim = 2 * E
    a_dim = 10
    c_s, c_e = 3, 5            # 1+|non_eu| .. 1+|non_eu|+|eu|
    B, S = 2, 8                # input_series length; full seq = S+1 = 9

    key = jax.random.PRNGKey(0)
    pkey, dkey = jax.random.split(key)
    params = init_params(pkey, E, nhead, Fdim, a_dim, conv_dim, num_layers)

    k1, k2, k3 = jax.random.split(dkey, 3)
    q_tokens = jax.random.normal(k1, (B, a_dim), jnp.float32)
    input_series = jax.random.normal(k2, (B, S, a_dim), jnp.float32)
    answers = jax.random.normal(k3, (B,), jnp.float32)
    known_lenths = np.array([5, 6], dtype=np.int64)
    auxil_lenths = np.array([2, 1], dtype=np.int64)

    model_output, target_head = intp_forward(
        params, q_tokens, known_lenths, auxil_lenths, input_series, answers,
        c_s, c_e, nhead, k_knn)

    for leaf in jax.tree_util.tree_leaves((model_output, target_head)):
        jax.block_until_ready(leaf)
    print("KERNEL_OK")
</pallas_src>

<mosaic_0001>
module attributes {stable_mosaic.version = 11 : i64} {
  func.func @_linear_kernel(%arg0: memref<18x20xf32, #tpu.memory_space<vmem>>, %arg1: memref<20x128xf32, #tpu.memory_space<vmem>>, %arg2: memref<1x128xf32, #tpu.memory_space<vmem>>, %arg3: memref<18x128xf32, #tpu.memory_space<vmem>>) attributes {dimension_semantics = [], scalar_prefetch = 0 : i64, scratch_operands = 0 : i64, tpu.core_type = #tpu.core_type<tc>} {
    %c0 = arith.constant 0 : index
    %c0_0 = arith.constant 0 : index
    %0 = vector.load %arg0[%c0, %c0_0] : memref<18x20xf32, #tpu.memory_space<vmem>>, vector<18x20xf32>
    %c0_1 = arith.constant 0 : index
    %c0_2 = arith.constant 0 : index
    %1 = vector.load %arg1[%c0_1, %c0_2] : memref<20x128xf32, #tpu.memory_space<vmem>>, vector<20x128xf32>
    %cst = arith.constant dense<0.000000e+00> : vector<18x128xf32>
    %2 = tpu.matmul %0, %1, %cst {dimension_numbers = #tpu.dot_dimension_numbers<[1], [0], [0], [1], [0, 0, 1, 1], [], []>} : vector<18x20xf32>, vector<20x128xf32>, vector<18x128xf32> -> vector<18x128xf32>
    %c0_3 = arith.constant 0 : index
    %c0_4 = arith.constant 0 : index
    %3 = vector.load %arg2[%c0_3, %c0_4] : memref<1x128xf32, #tpu.memory_space<vmem>>, vector<1x128xf32>
    %4 = vector.broadcast %3 : vector<1x128xf32> to vector<18x128xf32>
    %5 = arith.addf %2, %4 : vector<18x128xf32>
    %c0_5 = arith.constant 0 : index
    %c0_6 = arith.constant 0 : index
    %6 = vector.load %arg3[%c0_5, %c0_6] : memref<18x128xf32, #tpu.memory_space<vmem>>, vector<18x128xf32>
    tpu.vector_store %arg3[%c0_5, %c0_6], %5 {strides = array<i32>} : memref<18x128xf32, #tpu.memory_space<vmem>>, vector<18x128xf32>,
    return
  }
}

</mosaic_0001>

<llo_original>
// kernel: tpu_custom_call.1
$region0: #{tpu_custom_call.1}
  #allocation0 [shape = 'u32[]', space=smem, size = 0x4, offset = 0x4, fixed_abs, tag = 'smem constant byte address 0x4 - core index']
  #allocation1 [shape = 'u32[144,128]{1,0:T(1,128)}', space=vmem, size = 0x12000, scoped, tag = 'internal scratch']
  %s0 = inlined_call_operand.hbm [shape: f32[18,20], index: 0, kind: input, shape index: {}]
  %s1 = inlined_call_operand.hbm [shape: f32[20,128], index: 1, kind: input, shape index: {}]
  %s2 = inlined_call_operand.vmem [shape: f32[1,128], index: 2, kind: input, shape index: {}]
  %s3 = inlined_call_operand.hbm [shape: f32[18,128], index: 3, kind: output, shape index: {}]
  %s4 = sld [smem:[#allocation0]]
  $region30: #{tpu_custom_call.1} parent=0
    _
  %s6 = ssub.s32 1, %s4
  %s7 = scalar_select 0, %s6, %s4
  $region1: #{tpu_custom_call.1} parent=0
    #allocation2 [shape = 'u8[12288]{0}', space=vmem, size = 0x3000, scoped, tag = 'input window, operand 0, single buffered']
    #allocation3 [shape = 's32[1]{0}', space=sflag, size = 0x4, scoped, tag = 'scoped memory for tpu_custom_call.1']
    #allocation4 [shape = 's32[1]{0}', space=sflag, size = 0x4, scoped, tag = 'scoped memory for tpu_custom_call.1']
    #allocation5 [shape = 'u8[12288]{0}', space=vmem, size = 0x3000, scoped, tag = 'input window, operand 1, single buffered']
    #allocation6 [shape = 's32[1]{0}', space=sflag, size = 0x4, scoped, tag = 'scoped memory for tpu_custom_call.1']
    #allocation7 [shape = 'u8[12288]{0}', space=vmem, size = 0x3000, scoped, tag = 'output window, operand 0, single buffered']
    %8 = vsyncpa [#allocation3], 0
    %9 = vsyncpa [#allocation6], 0
    %10 = vsyncpa [#allocation4], 0
    // Predicated region
    $region2: #{tpu_custom_call.1} parent=1 // pred_check
      _
    $region3: #{tpu_custom_call.1} parent=1 // pred_check_branch
      %12 = sbr.rel (0) target = $region5
    $region4: #{tpu_custom_call.1} parent=1 // pred_region
      %s14 = ssub.s32 384, 384
      %15 = vsyncadd [#allocation3], %s14
      %s16 = sshll.u32 [#allocation2], 4
      %s17 = int_to_ptr.vmem [resolvable:$true] %s16
      %22 = dma.hbm_to_vmem [thread:$0]  %s0, 384, %s17, [#allocation3], 128, 128, 8
    $region5: #{tpu_custom_call.1} parent=1 // pred_fallthru
      _
    // Predicated region
    $region6: #{tpu_custom_call.1} parent=1 // pred_check
      _
    $region7: #{tpu_custom_call.1} parent=1 // pred_check_branch
      %24 = sbr.rel (0) target = $region9
    $region8: #{tpu_custom_call.1} parent=1 // pred_region
      %s26 = ssub.s32 384, 384
      %27 = vsyncadd [#allocation6], %s26
      %s28 = sshll.u32 [#allocation5], 4
      %s29 = int_to_ptr.vmem [resolvable:$true] %s28
      %34 = dma.hbm_to_vmem [thread:$0]  %s1, 384, %s29, [#allocation6], 128, 128, 8
    $region9: #{tpu_custom_call.1} parent=1 // pred_fallthru
      _
    // Predicated region
    $region10: #{tpu_custom_call.1} parent=1 // pred_check
      _
    $region11: #{tpu_custom_call.1} parent=1 // pred_check_branch
      %36 = sbr.rel (0) target = $region13
    $region12: #{tpu_custom_call.1} parent=1 // pred_region
      _
    $region13: #{tpu_custom_call.1} parent=1 // pred_fallthru
      _
    // Predicated region
    $region14: #{tpu_custom_call.1} parent=1 // pred_check
      _
    $region15: #{tpu_custom_call.1} parent=1 // pred_check_branch
      %38 = sbr.rel (0) target = $region17
    $region16: #{tpu_custom_call.1} parent=1 // pred_region
      %39 = dma.done [#allocation3], 384
    $region17: #{tpu_custom_call.1} parent=1 // pred_fallthru
      _
    // Predicated region
    $region18: #{tpu_custom_call.1} parent=1 // pred_check
      _
    $region19: #{tpu_custom_call.1} parent=1 // pred_check_branch
      %41 = sbr.rel (0) target = $region21
    $region20: #{tpu_custom_call.1} parent=1 // pred_region
      %42 = dma.done [#allocation6], 384
    $region21: #{tpu_custom_call.1} parent=1 // pred_fallthru
      _
    %v43 = vld [vmem:[#allocation2] sm:$0xff]
    %v44 = vld [vmem:[#allocation2 + $0x8] sm:$0xff]
    %v45 = vld [vmem:[#allocation2 + $0x10] sm:$0x3]
    %v46 = vld [vmem:[#allocation5] sm:$0xff]
    %v47 = vld [vmem:[#allocation5 + $0x8] sm:$0xff]
    %v48 = vld [vmem:[#allocation5 + $0x10] sm:$0xf]
    %v49 = vld [vmem:[%s2] sm:$0x1]
    %v51 = vlaneseq
    %v52 = vshrl.u32 %v51, 7
    %v53 = vsub.s32 0, %v52
    %v54 = vrot.slane %v49, %v53
    %vm56 = vcmask 162816
    %v58 = vsel %vm56, %v43, 0
    %v61 = vsel %vm56, %v44, 0
    %v64 = vsel %vm56, %v45, 0
    %vm66 = vcmask 1043456
    %v68 = vsel %vm66, %v48, 0
    %70 = vmatprep.subr.mxu0 0.0
    %71 = vmatpush1.msra.mxu0 %v46
    %72 = vmatprep.subr.mxu0 0.0
    %73 = vmatpush1.msra.mxu0 %v47
    %74 = vmatprep.subr.mxu0 0.0
    %75 = vmatpush1.msra.mxu0 %v68
    %76 = vmatprep.subr.mxu0 0.0
    %77 = vmatpush1.msra.mxu0 0.0
    %78 = vmatprep.subr.mxu0 0.0
    %79 = vmatpush1.msra.mxu0 0.0
    %80 = vmatprep.subr.mxu0 0.0
    %81 = vmatpush1.msra.mxu0 0.0
    %82 = vmatprep.subr.mxu0 0.0
    %83 = vmatpush1.msra.mxu0 0.0
    %84 = vmatprep.subr.mxu0 0.0
    %85 = vmatpush1.msra.mxu0 0.0
    %86 = vmatprep.subr.mxu0 0.0
    %87 = vmatpush1.msra.mxu0 0.0
    %88 = vmatprep.subr.mxu0 0.0
    %89 = vmatpush1.msra.mxu0 0.0
    %90 = vmatprep.subr.mxu0 0.0
    %91 = vmatpush1.msra.mxu0 0.0
    %92 = vmatprep.subr.mxu0 0.0
    %93 = vmatpush1.msra.mxu0 0.0
    %94 = vmatprep.subr.mxu0 0.0
    %95 = vmatpush1.msra.mxu0 0.0
    %96 = vmatprep.subr.mxu0 0.0
    %97 = vmatpush1.msra.mxu0 0.0
    %98 = vmatprep.subr.mxu0 0.0
    %99 = vmatpush1.msra.mxu0 0.0
    %100 = vmatprep.subr.mxu0 0.0
    %101 = vmatpush1.msra.mxu0 0.0
    %102 = vmatprep.subr.mxu0 0.0
    %103 = vmatpush1.msra.mxu0 0.0
    %104 = vmatprep.subr.mxu0 0.0
    %105 = vmatpush1.msra.mxu0 0.0
    %106 = vmatprep.subr.mxu0 0.0
    %107 = vmatpush1.msra.mxu0 0.0
    %108 = vmatprep.subr.mxu0 0.0
    %109 = vmatpush1.msra.mxu0 0.0
    %110 = vmatprep.subr.mxu0 0.0
    %111 = vmatpush1.msra.mxu0 0.0
    %112 = vmatprep.subr.mxu0 0.0
    %113 = vmatpush1.msra.mxu0 0.0
    %114 = vmatprep.subr.mxu0 0.0
    %115 = vmatpush1.msra.mxu0 0.0
    %116 = vmatprep.subr.mxu0 0.0
    %117 = vmatpush1.msra.mxu0 0.0
    %118 = vmatprep.subr.mxu0 0.0
    %119 = vmatpush1.msra.mxu0 0.0
    %120 = vmatprep.subr.mxu0 0.0
    %121 = vmatpush1.msra.mxu0 0.0
    %122 = vmatprep.subr.mxu0 0.0
    %123 = vmatpush1.msra.mxu0 0.0
    %124 = vmatprep.subr.mxu0 0.0
    %125 = vmatpush1.msra.mxu0 0.0
    %126 = vmatprep.subr.mxu0 0.0
    %127 = vmatpush1.msra.mxu0 0.0
    %128 = vmatprep.subr.mxu0 0.0
    %129 = vmatpush1.msra.mxu0 0.0
    %130 = vmatprep.subr.mxu0 0.0
    %131 = vmatpush1.msra.mxu0 0.0
    %132 = vmatprep.subr.mxu0 0.0
    %133 = vmatpush1.msra.mxu0 0.0
    %134 = vmatprep.mubr.f32.mxu0 0.0
    %135 = vmatmul.mubr.f32.gmra.mrb[0].mxu0 %v58
    %v136 = vpop.f32.mrb[0].mxu0
    %v137 = vadd.f32 %v54, %v136
    %v138 = vpop.f32.mrb[0].mxu0
    %139 = vmatprep.mubr.f32.mxu0 0.0
    %140 = vmatmul.mubr.f32.gmra.mrb[0].mxu0 %v61
    %v141 = vpop.f32.mrb[0].mxu0
    %v142 = vadd.f32 %v54, %v141
    %v143 = vpop.f32.mrb[0].mxu0
    %144 = vmatprep.mubr.f32.mxu0 0.0
    %145 = vmatmul.mubr.f32.gmra.mrb[0].mxu0 %v64
    %v146 = vpop.f32.mrb[0].mxu0
    %v147 = vadd.f32 %v54, %v146
    %v148 = vpop.f32.mrb[0].mxu0
    %149 = vdwg.mxu0
    %150 = vst [vmem:[#allocation7] sm:$0xff] %v137
    %151 = vst [vmem:[#allocation7 + $0x8] sm:$0xff] %v142
    %152 = vst [vmem:[#allocation7 + $0x10] sm:$0x3] %v147
    // Predicated region
    $region22: #{tpu_custom_call.1} parent=1 // pred_check
      _
    $region23: #{tpu_custom_call.1} parent=1 // pred_check_branch
      %154 = sbr.rel (0) target = $region25
    $region24: #{tpu_custom_call.1} parent=1 // pred_region
      %s156 = ssub.s32 384, 384
      %157 = vsyncadd [#allocation4], %s156
      %s158 = sshll.u32 [#allocation7], 4
      %s159 = int_to_ptr.vmem [resolvable:$true] %s158
      %164 = dma.vmem_to_hbm [thread:$0]  %s159, 384, %s3, [#allocation4], 128, 128, 8
    $region25: #{tpu_custom_call.1} parent=1 // pred_fallthru
      _
    // Predicated region
    $region26: #{tpu_custom_call.1} parent=1 // pred_check
      _
    $region27: #{tpu_custom_call.1} parent=1 // pred_check_branch
      %166 = sbr.rel (0) target = $region29
    $region28: #{tpu_custom_call.1} parent=1 // pred_region
      %167 = dma.done [#allocation4], 384
    $region29: #{tpu_custom_call.1} parent=1 // pred_fallthru
      _
    %168 = vsyncpa [#allocation3], 1
    %169 = vsyncpa [#allocation6], 1
    %170 = vsyncpa [#allocation4], 1

</llo_original>
